<compile_context>
chip_gen: v5e
topology: v5e:2x2
jax: 0.10.0
libtpu: 0.0.40
codegen_flags: <defaults>
</compile_context>

<pallas_src>
import functools

import jax
import jax.numpy as jnp
from jax.experimental import pallas as pl
from jax.experimental.pallas import tpu as pltpu

_LANE = 128


def _round_up(x, m):
    return (x + m - 1) // m * m


def _fused_mlp_kernel(*refs, num_layers, negative_slope, compute_dtype, precision):
    """Fused MLP on one row tile.

    refs = (x_ref, w0, b0, w1, b1, ..., o_ref)
      x_ref: [TN, F_in]        (row tile straight from HBM, contiguous DMA)
      w_l:   [F_out_l, F_in_l] (PyTorch layout, full-extent block, compute_dtype)
      b_l:   [F_out_l, 1]      (f32)
      o_ref: [TN, F_out]
    """
    x_ref, o_ref = refs[0], refs[-1]
    p_refs = refs[1:-1]

    # In-kernel relayout [TN, F_in] -> [F_in, TN]: feature-major, so the large
    # row dimension sits on the 128-lane axis for every matmul / intermediate.
    # The transpose runs on the XLU, an idle slot in this DMA-bound kernel.
    h = jnp.transpose(x_ref[...].astype(jnp.float32)).astype(compute_dtype)

    for l in range(num_layers):
        w = p_refs[2 * l][...]                              # [F_out_l, F_in_l]
        b = p_refs[2 * l + 1][...]                          # [F_out_l, 1] f32
        h = jnp.dot(w, h, preferred_element_type=jnp.float32,
                    precision=precision)                    # [F_out_l, TN] f32 acc
        h = h + b                                           # f32 epilogue (tiny; lane-broadcast)
        if l < num_layers - 1:                              # LeakyReLU(0.2)
            h = jnp.where(h >= 0.0, h, negative_slope * h)
            h = h.astype(compute_dtype)                     # MXU operands in compute dtype

    # Back to row-major [TN, F_out] so the store matches the HBM layout and
    # no wrapper-side output transpose (extra HBM pass) is needed.
    o_ref[...] = jnp.transpose(h).astype(o_ref.dtype)


def _pick_row_tile(n, row_tile):
    """Rows per grid step: lane-dense (mult. of 128) for large N, and at least
    two tiles so a 'parallel' grid axis can feed both v7x TensorCores."""
    if n < 8:
        return n
    if n <= 256:
        return n if n % 8 == 0 else (n // 8) * 8
    tn = min(row_tile, _round_up(-(-n // 2), _LANE))
    return max(tn, _LANE)


def _est_vmem_bytes(tn, f_in, f_out, widest, x_itemsize, out_itemsize, param_bytes):
    # I/O tiles are (8,128)-tiled in VMEM => minor dim pads to a full 128 lanes.
    x_tile = tn * _round_up(f_in, _LANE) * x_itemsize
    o_tile = tn * _round_up(f_out, _LANE) * out_itemsize
    inter = widest * _round_up(tn, _LANE) * 4           # f32 feature-major intermediates
    return 2 * x_tile + 2 * o_tile + 2 * param_bytes + 4 * inter


def mlp_forward(x, params, *, negative_slope=0.2, row_tile=4096,
                compute_dtype=jnp.bfloat16, out_dtype=None, precision=None):
    """Eval-mode MLP forward.

    x: [N, F_in] (any float dtype; pass bf16 to halve the input HBM bytes —
       MXU operands are cast in-kernel, so an f32 x is NOT copied/quantized in
       HBM).  params: [(w [out, in], b [out, 1])] in PyTorch layout.
    compute_dtype: MXU operand dtype (default bf16; bias + LeakyReLU stay f32).
    """
    n, f_in = x.shape
    assert params and params[0][0].shape[1] == f_in
    assert row_tile % _LANE == 0
    f_out = params[-1][0].shape[0]
    out_dtype = x.dtype if out_dtype is None else out_dtype
    num_layers = len(params)

    if precision is None:
        # True-f32 matmul when asked for f32; bf16 path uses the default pass.
        precision = (jax.lax.Precision.HIGHEST if compute_dtype == jnp.float32
                     else jax.lax.Precision.DEFAULT)

    # Weights in compute dtype (tiny, VMEM-resident via constant index_map);
    # biases stay f32 for the epilogue.
    ws = [w.astype(compute_dtype) for w, _ in params]
    bs = [b.astype(jnp.float32) for _, b in params]

    # Row tile: large, lane-dense, >=2 tiles when worthwhile; shrink if the
    # estimated VMEM footprint would exceed the budget.
    tn = _pick_row_tile(n, row_tile)
    widest = max([f_in] + [w.shape[0] for w, _ in params])
    param_bytes = sum(w.size * w.dtype.itemsize for w in ws) + \
                  sum(b.size * b.dtype.itemsize for b in bs)
    budget = 28 * 1024 * 1024
    while _est_vmem_bytes(tn, f_in, f_out, widest, x.dtype.itemsize,
                          jnp.dtype(out_dtype).itemsize, param_bytes) > budget \
            and tn > _LANE:
        tn = max(_LANE, tn // 2)

    grid = (pl.cdiv(n, tn),)

    in_specs = [pl.BlockSpec((tn, f_in), lambda i: (i, 0))]
    flat_params = []
    for w, b in zip(ws, bs):
        in_specs.append(pl.BlockSpec(w.shape, lambda i: (0, 0)))
        in_specs.append(pl.BlockSpec(b.shape, lambda i: (0, 0)))
        flat_params += [w, b]

    # Advisory cost estimate (one read of x, params, one write of out).
    flops = int(2 * n * sum(w.shape[0] * w.shape[1] for w, _ in params))
    bytes_accessed = int(x.size * x.dtype.itemsize + param_bytes
                         + n * f_out * jnp.dtype(out_dtype).itemsize)

    # Always set the scoped-VMEM limit explicitly (v5e default is ~16 MiB and
    # would silently lose pipelining / fail in the 16-24 MiB window); cap at
    # 40 MiB to leave headroom under v7x's 64 MiB physical VMEM.
    est_vmem = _est_vmem_bytes(tn, f_in, f_out, widest, x.dtype.itemsize,
                               jnp.dtype(out_dtype).itemsize, param_bytes)
    vmem_limit = int(min(40 * 1024 * 1024, max(2 * est_vmem, 16 * 1024 * 1024)))

    kernel = functools.partial(_fused_mlp_kernel, num_layers=num_layers,
                               negative_slope=negative_slope,
                               compute_dtype=compute_dtype,
                               precision=precision)

    return pl.pallas_call(
        kernel,
        out_shape=jax.ShapeDtypeStruct((n, f_out), out_dtype),
        grid=grid,
        in_specs=in_specs,
        out_specs=pl.BlockSpec((tn, f_out), lambda i: (i, 0)),
        compiler_params=pltpu.CompilerParams(
            dimension_semantics=("parallel",),
            vmem_limit_bytes=vmem_limit),
        cost_estimate=pl.CostEstimate(flops=flops, transcendentals=0,
                                      bytes_accessed=bytes_accessed),
    )(x, *flat_params)


def init_mlp_params(key, sizes):
    """PyTorch-style Linear init: U(-1/sqrt(fan_in), 1/sqrt(fan_in)).

    Returns [(w [out, in], b [out, 1])] — PyTorch's native weight layout,
    consumed directly by the feature-major kernel (h <- W @ h + b)."""
    params = []
    for i in range(1, len(sizes)):
        fan_in, fan_out = sizes[i - 1], sizes[i]
        key, kw, kb = jax.random.split(key, 3)
        bound = 1.0 / float(fan_in) ** 0.5
        w = jax.random.uniform(kw, (fan_out, fan_in), jnp.float32,
                               minval=-bound, maxval=bound)
        b = jax.random.uniform(kb, (fan_out,), jnp.float32,
                               minval=-bound, maxval=bound)
        params.append((w, b[:, None]))
    return params


def mlp_reference(x, params, negative_slope=0.2):
    n_layers = len(params)
    h = x.astype(jnp.float32)
    for i, (w, b) in enumerate(params):
        h = h @ w.T + b[:, 0]
        if i < n_layers - 1:
            h = jnp.where(h >= 0.0, h, negative_slope * h)
    return h.astype(jnp.float32)


if __name__ == "__main__":
    key = jax.random.PRNGKey(0)
    # MLP(16, 32, 32, 8, dropout=0.1, batchnorm=False), eval mode.
    sizes = (16, 32, 32, 8)
    kx, kp = jax.random.split(key)
    params = init_mlp_params(kp, sizes)

    # Small batch, single tile — f32 path with HIGHEST-precision MXU.
    x_small = jax.random.normal(kx, (8, sizes[0]), jnp.float32)
    out = jax.block_until_ready(
        mlp_forward(x_small, params, compute_dtype=jnp.float32))
    ref = mlp_reference(x_small, params)
    assert out.shape == (8, sizes[-1])
    assert jnp.allclose(out, ref, atol=1e-5, rtol=1e-5), "f32 mismatch (small)"

    # Gridded + ragged-last-tile path (1000 rows -> tiles of 512 + 488 valid),
    # default bf16 MXU-operand storage.
    x_big = jax.random.normal(kx, (1000, sizes[0]), jnp.float32)
    out_big = jax.block_until_ready(mlp_forward(x_big, params))
    ref_big = mlp_reference(x_big, params)
    assert out_big.shape == (1000, sizes[-1])
    assert jnp.allclose(out_big, ref_big, atol=5e-2, rtol=5e-2), "bf16 mismatch (grid)"

    # Same shape, explicit f32 compute — tight tolerance.
    out_f32 = jax.block_until_ready(
        mlp_forward(x_big, params, compute_dtype=jnp.float32))
    assert jnp.allclose(out_f32, ref_big, atol=1e-5, rtol=1e-5), "f32 mismatch (grid)"

    # bf16-stored input (halves x HBM bytes when upstream already holds bf16).
    out_bf = jax.block_until_ready(mlp_forward(x_big.astype(jnp.bfloat16), params))
    assert out_bf.dtype == jnp.bfloat16
    assert jnp.allclose(out_bf.astype(jnp.float32), ref_big,
                        atol=5e-2, rtol=5e-2), "bf16-input mismatch"

    print("KERNEL_OK")
</pallas_src>

<mosaic_0001>
module attributes {stable_mosaic.version = 11 : i64} {
  func.func @_fused_mlp_kernel(%arg0: i32, %arg1: memref<8x16xf32, #tpu.memory_space<vmem>>, %arg2: memref<32x16xf32, #tpu.memory_space<vmem>>, %arg3: memref<32x1xf32, #tpu.memory_space<vmem>>, %arg4: memref<32x32xf32, #tpu.memory_space<vmem>>, %arg5: memref<32x1xf32, #tpu.memory_space<vmem>>, %arg6: memref<8x32xf32, #tpu.memory_space<vmem>>, %arg7: memref<8x1xf32, #tpu.memory_space<vmem>>, %arg8: memref<8x8xf32, #tpu.memory_space<vmem>>) attributes {dimension_semantics = [#tpu.dimension_semantics<parallel>], iteration_bounds = array<i64: 1>, scalar_prefetch = 0 : i64, scratch_operands = 0 : i64, tpu.core_type = #tpu.core_type<tc>, window_params = [{transform_indices = @transform_0, window_bounds = array<i64: 8, 16>}, {pipeline_mode = #tpu.pipeline_mode<synchronous>, transform_indices = @transform_1, window_bounds = array<i64: 32, 16>}, {pipeline_mode = #tpu.pipeline_mode<synchronous>, transform_indices = @transform_2, window_bounds = array<i64: 32, 1>}, {pipeline_mode = #tpu.pipeline_mode<synchronous>, transform_indices = @transform_3, window_bounds = array<i64: 32, 32>}, {pipeline_mode = #tpu.pipeline_mode<synchronous>, transform_indices = @transform_4, window_bounds = array<i64: 32, 1>}, {pipeline_mode = #tpu.pipeline_mode<synchronous>, transform_indices = @transform_5, window_bounds = array<i64: 8, 32>}, {pipeline_mode = #tpu.pipeline_mode<synchronous>, transform_indices = @transform_6, window_bounds = array<i64: 8, 1>}, {transform_indices = @transform_7, window_bounds = array<i64: 8, 8>}]} {
    %c0 = arith.constant 0 : index
    %c0_0 = arith.constant 0 : index
    %0 = vector.load %arg1[%c0, %c0_0] : memref<8x16xf32, #tpu.memory_space<vmem>>, vector<8x16xf32>
    %1 = tpu.transpose %0, [1, 0] : vector<8x16xf32> -> vector<16x8xf32>
    %c0_1 = arith.constant 0 : index
    %c0_2 = arith.constant 0 : index
    %2 = vector.load %arg2[%c0_1, %c0_2] : memref<32x16xf32, #tpu.memory_space<vmem>>, vector<32x16xf32>
    %c0_3 = arith.constant 0 : index
    %c0_4 = arith.constant 0 : index
    %3 = vector.load %arg3[%c0_3, %c0_4] : memref<32x1xf32, #tpu.memory_space<vmem>>, vector<32x1xf32>
    %cst = arith.constant dense<0.000000e+00> : vector<32x8xf32>
    %4 = tpu.matmul %2, %1, %cst {dimension_numbers = #tpu.dot_dimension_numbers<[1], [0], [0], [1], [0, 0, 1, 1], [], []>, precision = #tpu.contract_precision<fp32>} : vector<32x16xf32>, vector<16x8xf32>, vector<32x8xf32> -> vector<32x8xf32>
    %5 = vector.broadcast %3 : vector<32x1xf32> to vector<32x8xf32>
    %6 = arith.addf %4, %5 : vector<32x8xf32>
    %cst_5 = arith.constant 0.000000e+00 : f32
    %7 = vector.broadcast %cst_5 : f32 to vector<32x8xf32>
    %8 = arith.cmpf oge, %6, %7 : vector<32x8xf32>
    %cst_6 = arith.constant 2.000000e-01 : f32
    %9 = vector.broadcast %cst_6 : f32 to vector<32x8xf32>
    %10 = arith.mulf %9, %6 : vector<32x8xf32>
    %11 = arith.select %8, %6, %10 : vector<32x8xi1>, vector<32x8xf32>
    %c0_7 = arith.constant 0 : index
    %c0_8 = arith.constant 0 : index
    %12 = vector.load %arg4[%c0_7, %c0_8] : memref<32x32xf32, #tpu.memory_space<vmem>>, vector<32x32xf32>
    %c0_9 = arith.constant 0 : index
    %c0_10 = arith.constant 0 : index
    %13 = vector.load %arg5[%c0_9, %c0_10] : memref<32x1xf32, #tpu.memory_space<vmem>>, vector<32x1xf32>
    %cst_11 = arith.constant dense<0.000000e+00> : vector<32x8xf32>
    %14 = tpu.matmul %12, %11, %cst_11 {dimension_numbers = #tpu.dot_dimension_numbers<[1], [0], [0], [1], [0, 0, 1, 1], [], []>, precision = #tpu.contract_precision<fp32>} : vector<32x32xf32>, vector<32x8xf32>, vector<32x8xf32> -> vector<32x8xf32>
    %15 = vector.broadcast %13 : vector<32x1xf32> to vector<32x8xf32>
    %16 = arith.addf %14, %15 : vector<32x8xf32>
    %cst_12 = arith.constant 0.000000e+00 : f32
    %17 = vector.broadcast %cst_12 : f32 to vector<32x8xf32>
    %18 = arith.cmpf oge, %16, %17 : vector<32x8xf32>
    %cst_13 = arith.constant 2.000000e-01 : f32
    %19 = vector.broadcast %cst_13 : f32 to vector<32x8xf32>
    %20 = arith.mulf %19, %16 : vector<32x8xf32>
    %21 = arith.select %18, %16, %20 : vector<32x8xi1>, vector<32x8xf32>
    %c0_14 = arith.constant 0 : index
    %c0_15 = arith.constant 0 : index
    %22 = vector.load %arg6[%c0_14, %c0_15] : memref<8x32xf32, #tpu.memory_space<vmem>>, vector<8x32xf32>
    %c0_16 = arith.constant 0 : index
    %c0_17 = arith.constant 0 : index
    %23 = vector.load %arg7[%c0_16, %c0_17] : memref<8x1xf32, #tpu.memory_space<vmem>>, vector<8x1xf32>
    %cst_18 = arith.constant dense<0.000000e+00> : vector<8x8xf32>
    %24 = tpu.matmul %22, %21, %cst_18 {dimension_numbers = #tpu.dot_dimension_numbers<[1], [0], [0], [1], [0, 0, 1, 1], [], []>, precision = #tpu.contract_precision<fp32>} : vector<8x32xf32>, vector<32x8xf32>, vector<8x8xf32> -> vector<8x8xf32>
    %25 = vector.broadcast %23 : vector<8x1xf32> to vector<8x8xf32>
    %26 = arith.addf %24, %25 : vector<8x8xf32>
    %27 = tpu.transpose %26, [1, 0] : vector<8x8xf32> -> vector<8x8xf32>
    %c0_19 = arith.constant 0 : index
    %c0_20 = arith.constant 0 : index
    %28 = vector.load %arg8[%c0_19, %c0_20] : memref<8x8xf32, #tpu.memory_space<vmem>>, vector<8x8xf32>
    tpu.vector_store %arg8[%c0_19, %c0_20], %27 {strides = array<i32>} : memref<8x8xf32, #tpu.memory_space<vmem>>, vector<8x8xf32>,
    return
  }
  func.func @transform_0(%arg0: i32) -> (i32, i32) {
    %c0_i32 = arith.constant 0 : i32
    %c0_i32_0 = arith.constant 0 : i32
    return %arg0, %c0_i32 : i32, i32
  }
  func.func @transform_1(%arg0: i32) -> (i32, i32) {
    %c0_i32 = arith.constant 0 : i32
    %c0_i32_0 = arith.constant 0 : i32
    %c0_i32_1 = arith.constant 0 : i32
    return %c0_i32, %c0_i32_0 : i32, i32
  }
  func.func @transform_2(%arg0: i32) -> (i32, i32) {
    %c0_i32 = arith.constant 0 : i32
    %c0_i32_0 = arith.constant 0 : i32
    %c0_i32_1 = arith.constant 0 : i32
    return %c0_i32, %c0_i32_0 : i32, i32
  }
  func.func @transform_3(%arg0: i32) -> (i32, i32) {
    %c0_i32 = arith.constant 0 : i32
    %c0_i32_0 = arith.constant 0 : i32
    %c0_i32_1 = arith.constant 0 : i32
    return %c0_i32, %c0_i32_0 : i32, i32
  }
  func.func @transform_4(%arg0: i32) -> (i32, i32) {
    %c0_i32 = arith.constant 0 : i32
    %c0_i32_0 = arith.constant 0 : i32
    %c0_i32_1 = arith.constant 0 : i32
    return %c0_i32, %c0_i32_0 : i32, i32
  }
  func.func @transform_5(%arg0: i32) -> (i32, i32) {
    %c0_i32 = arith.constant 0 : i32
    %c0_i32_0 = arith.constant 0 : i32
    %c0_i32_1 = arith.constant 0 : i32
    return %c0_i32, %c0_i32_0 : i32, i32
  }
  func.func @transform_6(%arg0: i32) -> (i32, i32) {
    %c0_i32 = arith.constant 0 : i32
    %c0_i32_0 = arith.constant 0 : i32
    %c0_i32_1 = arith.constant 0 : i32
    return %c0_i32, %c0_i32_0 : i32, i32
  }
  func.func @transform_7(%arg0: i32) -> (i32, i32) {
    %c0_i32 = arith.constant 0 : i32
    %c0_i32_0 = arith.constant 0 : i32
    return %arg0, %c0_i32 : i32, i32
  }
}

</mosaic_0001>

<llo_original>
// kernel: tpu_custom_call.1
$region0: #{tpu_custom_call.1}
  #allocation0 [shape = 'u32[]', space=smem, size = 0x4, offset = 0x4, fixed_abs, tag = 'smem constant byte address 0x4 - core index']
  #allocation1 [shape = 'u32[72,128]{1,0:T(1,128)}', space=vmem, size = 0x9000, scoped, tag = 'internal scratch']
  %s0 = inlined_call_operand.vmem [shape: f32[8,16], index: 0, kind: input, shape index: {}]
  %s1 = inlined_call_operand.vmem [shape: f32[32,16], index: 1, kind: input, shape index: {}]
  %s2 = inlined_call_operand.vmem [shape: f32[32,1], index: 2, kind: input, shape index: {}]
  %s3 = inlined_call_operand.vmem [shape: f32[32,32], index: 3, kind: input, shape index: {}]
  %s4 = inlined_call_operand.vmem [shape: f32[32,1], index: 4, kind: input, shape index: {}]
  %s5 = inlined_call_operand.vmem [shape: f32[8,32], index: 5, kind: input, shape index: {}]
  %s6 = inlined_call_operand.vmem [shape: f32[8,1], index: 6, kind: input, shape index: {}]
  %s7 = inlined_call_operand.hbm [shape: f32[8,8], index: 7, kind: output, shape index: {}]
  %s8 = sld [smem:[#allocation0]]
  $region38: #{tpu_custom_call.1} parent=0
    _
  %s10 = ssub.s32 1, %s8
  %s11 = scalar_select 0, %s10, %s8
  $region1: #{tpu_custom_call.1} parent=0
    #allocation2 [shape = 'u8[4096]{0}', space=vmem, size = 0x1000, scoped, tag = 'output window, operand 0, single buffered']
    #allocation3 [shape = 's32[1]{0}', space=sflag, size = 0x4, scoped, tag = 'scoped memory for tpu_custom_call.1']
    %12 = vsyncpa [#allocation3], 0
    // Predicated region
    $region2: #{tpu_custom_call.1} parent=1 // pred_check
      _
    $region3: #{tpu_custom_call.1} parent=1 // pred_check_branch
      %14 = sbr.rel (0) target = $region5
    $region4: #{tpu_custom_call.1} parent=1 // pred_region
      _
    $region5: #{tpu_custom_call.1} parent=1 // pred_fallthru
      _
    // Predicated region
    $region6: #{tpu_custom_call.1} parent=1 // pred_check
      _
    $region7: #{tpu_custom_call.1} parent=1 // pred_check_branch
      %16 = sbr.rel (0) target = $region9
    $region8: #{tpu_custom_call.1} parent=1 // pred_region
      _
    $region9: #{tpu_custom_call.1} parent=1 // pred_fallthru
      _
    // Predicated region
    $region10: #{tpu_custom_call.1} parent=1 // pred_check
      _
    $region11: #{tpu_custom_call.1} parent=1 // pred_check_branch
      %18 = sbr.rel (0) target = $region13
    $region12: #{tpu_custom_call.1} parent=1 // pred_region
      _
    $region13: #{tpu_custom_call.1} parent=1 // pred_fallthru
      _
    // Predicated region
    $region14: #{tpu_custom_call.1} parent=1 // pred_check
      _
    $region15: #{tpu_custom_call.1} parent=1 // pred_check_branch
      %20 = sbr.rel (0) target = $region17
    $region16: #{tpu_custom_call.1} parent=1 // pred_region
      _
    $region17: #{tpu_custom_call.1} parent=1 // pred_fallthru
      _
    // Predicated region
    $region18: #{tpu_custom_call.1} parent=1 // pred_check
      _
    $region19: #{tpu_custom_call.1} parent=1 // pred_check_branch
      %22 = sbr.rel (0) target = $region21
    $region20: #{tpu_custom_call.1} parent=1 // pred_region
      _
    $region21: #{tpu_custom_call.1} parent=1 // pred_fallthru
      _
    // Predicated region
    $region22: #{tpu_custom_call.1} parent=1 // pred_check
      _
    $region23: #{tpu_custom_call.1} parent=1 // pred_check_branch
      %24 = sbr.rel (0) target = $region25
    $region24: #{tpu_custom_call.1} parent=1 // pred_region
      _
    $region25: #{tpu_custom_call.1} parent=1 // pred_fallthru
      _
    // Predicated region
    $region26: #{tpu_custom_call.1} parent=1 // pred_check
      _
    $region27: #{tpu_custom_call.1} parent=1 // pred_check_branch
      %26 = sbr.rel (0) target = $region29
    $region28: #{tpu_custom_call.1} parent=1 // pred_region
      _
    $region29: #{tpu_custom_call.1} parent=1 // pred_fallthru
      _
    %v27 = vld [vmem:[%s0] sm:$0xff]
    %v28 = vld [vmem:[%s1] sm:$0xff]
    %v29 = vld [vmem:[%s1 + $0x8] sm:$0xff]
    %v30 = vld [vmem:[%s1 + $0x10] sm:$0xff]
    %v31 = vld [vmem:[%s1 + $0x18] sm:$0xff]
    %v32 = vld [vmem:[%s2] sm:$0xff]
    %v33 = vld [vmem:[%s2 + $0x8] sm:$0xff]
    %v34 = vld [vmem:[%s2 + $0x10] sm:$0xff]
    %v35 = vld [vmem:[%s2 + $0x18] sm:$0xff]
    %37 = vset.pattern.permute.xlu0 0
    %38 = vperm.xlu0 %37, %v32
    %v39 = vpop.permute.xlu0 %38
    %42 = vset.pattern.permute.xlu0 0
    %43 = vperm.xlu0 %42, %v33
    %v44 = vpop.permute.xlu0 %43
    %47 = vset.pattern.permute.xlu0 0
    %48 = vperm.xlu0 %47, %v34
    %v49 = vpop.permute.xlu0 %48
    %52 = vset.pattern.permute.xlu0 0
    %53 = vperm.xlu0 %52, %v35
    %v54 = vpop.permute.xlu0 %53
    %vm56 = vcmask 130048
    %v58 = vsel %vm56, %v28, 0
    %v61 = vsel %vm56, %v29, 0
    %v64 = vsel %vm56, %v30, 0
    %v67 = vsel %vm56, %v31, 0
    %v70 = vsel %vm56, %v27, 0
    %72 = vmatpush.xpose.msra.mxu0 0.0
    %73 = vmatpush.xpose.msra.mxu0 0.0
    %74 = vmatpush.xpose.msra.mxu0 0.0
    %75 = vmatpush.xpose.msra.mxu0 0.0
    %76 = vmatpush.xpose.msra.mxu0 0.0
    %77 = vmatpush.xpose.msra.mxu0 0.0
    %78 = vmatpush.xpose.msra.mxu0 0.0
    %79 = vmatpush.xpose.msra.mxu0 0.0
    %80 = vmatpush.xpose.msra.mxu0 0.0
    %81 = vmatpush.xpose.msra.mxu0 0.0
    %82 = vmatpush.xpose.msra.mxu0 0.0
    %83 = vmatpush.xpose.msra.mxu0 0.0
    %84 = vmatpush.xpose.msra.mxu0 0.0
    %85 = vmatpush.xpose.msra.mxu0 0.0
    %86 = vmatpush.xpose.msra.mxu0 0.0
    %v87 = vand.u32 %v70, 4294901760
    %88 = vmatpush.xpose.msra.mxu0 %v87
    %v89 = vand.u32 %v58, 4294901760
    %v90 = vsub.f32 %v58, %v89
    %v91 = vand.u32 %v90, 4294901760
    %v92 = vsub.f32 %v90, %v91
    %v93 = vand.u32 %v92, 4294901760
    %94 = vmatmul.f32.gmra.mxu0 %v93
    %v95 = vpop.f32.mrf.mxu0
    %v96 = vadd.f32 %v39, %v95
    %v97 = vand.u32 %v61, 4294901760
    %v98 = vsub.f32 %v61, %v97
    %v99 = vand.u32 %v98, 4294901760
    %v100 = vsub.f32 %v98, %v99
    %v101 = vand.u32 %v100, 4294901760
    %102 = vmatmul.f32.gmra.mxu0 %v101
    %v103 = vpop.f32.mrf.mxu0
    %v104 = vadd.f32 %v44, %v103
    %v105 = vand.u32 %v64, 4294901760
    %v106 = vsub.f32 %v64, %v105
    %v107 = vand.u32 %v106, 4294901760
    %v108 = vsub.f32 %v106, %v107
    %v109 = vand.u32 %v108, 4294901760
    %110 = vmatmul.f32.gmra.mxu0 %v109
    %v111 = vpop.f32.mrf.mxu0
    %v112 = vadd.f32 %v49, %v111
    %v113 = vand.u32 %v67, 4294901760
    %v114 = vsub.f32 %v67, %v113
    %v115 = vand.u32 %v114, 4294901760
    %v116 = vsub.f32 %v114, %v115
    %v117 = vand.u32 %v116, 4294901760
    %118 = vmatmul.f32.gmra.mxu0 %v117
    %v119 = vpop.f32.mrf.mxu0
    %v120 = vadd.f32 %v54, %v119
    %121 = vdwg.mxu0
    %122 = vmatpush.xpose.msra.mxu0 0.0
    %123 = vmatpush.xpose.msra.mxu0 0.0
    %124 = vmatpush.xpose.msra.mxu0 0.0
    %125 = vmatpush.xpose.msra.mxu0 0.0
    %126 = vmatpush.xpose.msra.mxu0 0.0
    %127 = vmatpush.xpose.msra.mxu0 0.0
    %128 = vmatpush.xpose.msra.mxu0 0.0
    %129 = vmatpush.xpose.msra.mxu0 0.0
    %130 = vmatpush.xpose.msra.mxu0 0.0
    %131 = vmatpush.xpose.msra.mxu0 0.0
    %132 = vmatpush.xpose.msra.mxu0 0.0
    %133 = vmatpush.xpose.msra.mxu0 0.0
    %134 = vmatpush.xpose.msra.mxu0 0.0
    %135 = vmatpush.xpose.msra.mxu0 0.0
    %136 = vmatpush.xpose.msra.mxu0 0.0
    %v137 = vand.u32 %v70, 4294901760
    %v138 = vsub.f32 %v70, %v137
    %v139 = vand.u32 %v138, 4294901760
    %v140 = vsub.f32 %v138, %v139
    %v141 = vand.u32 %v140, 4294901760
    %142 = vmatpush.xpose.msra.mxu0 %v141
    %v143 = vand.u32 %v58, 4294901760
    %144 = vmatmul.f32.gmra.mxu0 %v143
    %v145 = vpop.f32.mrf.mxu0
    %v146 = vadd.f32 %v96, %v145
    %v147 = vand.u32 %v61, 4294901760
    %148 = vmatmul.f32.gmra.mxu0 %v147
    %v149 = vpop.f32.mrf.mxu0
    %v150 = vadd.f32 %v104, %v149
    %v151 = vand.u32 %v64, 4294901760
    %152 = vmatmul.f32.gmra.mxu0 %v151
    %v153 = vpop.f32.mrf.mxu0
    %v154 = vadd.f32 %v112, %v153
    %v155 = vand.u32 %v67, 4294901760
    %156 = vmatmul.f32.gmra.mxu0 %v155
    %v157 = vpop.f32.mrf.mxu0
    %v158 = vadd.f32 %v120, %v157
    %159 = vdwg.mxu0
    %160 = vmatpush.xpose.msra.mxu0 0.0
    %161 = vmatpush.xpose.msra.mxu0 0.0
    %162 = vmatpush.xpose.msra.mxu0 0.0
    %163 = vmatpush.xpose.msra.mxu0 0.0
    %164 = vmatpush.xpose.msra.mxu0 0.0
    %165 = vmatpush.xpose.msra.mxu0 0.0
    %166 = vmatpush.xpose.msra.mxu0 0.0
    %167 = vmatpush.xpose.msra.mxu0 0.0
    %168 = vmatpush.xpose.msra.mxu0 0.0
    %169 = vmatpush.xpose.msra.mxu0 0.0
    %170 = vmatpush.xpose.msra.mxu0 0.0
    %171 = vmatpush.xpose.msra.mxu0 0.0
    %172 = vmatpush.xpose.msra.mxu0 0.0
    %173 = vmatpush.xpose.msra.mxu0 0.0
    %174 = vmatpush.xpose.msra.mxu0 0.0
    %v175 = vand.u32 %v70, 4294901760
    %v176 = vsub.f32 %v70, %v175
    %177 = vmatpush.xpose.msra.mxu0 %v176
    %v178 = vand.u32 %v58, 4294901760
    %v179 = vsub.f32 %v58, %v178
    %180 = vmatmul.f32.gmra.mxu0 %v179
    %v181 = vpop.f32.mrf.mxu0
    %v182 = vadd.f32 %v146, %v181
    %v183 = vand.u32 %v61, 4294901760
    %v184 = vsub.f32 %v61, %v183
    %185 = vmatmul.f32.gmra.mxu0 %v184
    %v186 = vpop.f32.mrf.mxu0
    %v187 = vadd.f32 %v150, %v186
    %v188 = vand.u32 %v64, 4294901760
    %v189 = vsub.f32 %v64, %v188
    %190 = vmatmul.f32.gmra.mxu0 %v189
    %v191 = vpop.f32.mrf.mxu0
    %v192 = vadd.f32 %v154, %v191
    %v193 = vand.u32 %v67, 4294901760
    %v194 = vsub.f32 %v67, %v193
    %195 = vmatmul.f32.gmra.mxu0 %v194
    %v196 = vpop.f32.mrf.mxu0
    %v197 = vadd.f32 %v158, %v196
    %198 = vdwg.mxu0
    %199 = vmatpush.xpose.msra.mxu0 0.0
    %200 = vmatpush.xpose.msra.mxu0 0.0
    %201 = vmatpush.xpose.msra.mxu0 0.0
    %202 = vmatpush.xpose.msra.mxu0 0.0
    %203 = vmatpush.xpose.msra.mxu0 0.0
    %204 = vmatpush.xpose.msra.mxu0 0.0
    %205 = vmatpush.xpose.msra.mxu0 0.0
    %206 = vmatpush.xpose.msra.mxu0 0.0
    %207 = vmatpush.xpose.msra.mxu0 0.0
    %208 = vmatpush.xpose.msra.mxu0 0.0
    %209 = vmatpush.xpose.msra.mxu0 0.0
    %210 = vmatpush.xpose.msra.mxu0 0.0
    %211 = vmatpush.xpose.msra.mxu0 0.0
    %212 = vmatpush.xpose.msra.mxu0 0.0
    %213 = vmatpush.xpose.msra.mxu0 0.0
    %v214 = vand.u32 %v70, 4294901760
    %215 = vmatpush.xpose.msra.mxu0 %v214
    %v216 = vand.u32 %v58, 4294901760
    %v217 = vsub.f32 %v58, %v216
    %v218 = vand.u32 %v217, 4294901760
    %219 = vmatmul.f32.gmra.mxu0 %v218
    %v220 = vpop.f32.mrf.mxu0
    %v221 = vadd.f32 %v182, %v220
    %v222 = vand.u32 %v61, 4294901760
    %v223 = vsub.f32 %v61, %v222
    %v224 = vand.u32 %v223, 4294901760
    %225 = vmatmul.f32.gmra.mxu0 %v224
    %v226 = vpop.f32.mrf.mxu0
    %v227 = vadd.f32 %v187, %v226
    %v228 = vand.u32 %v64, 4294901760
    %v229 = vsub.f32 %v64, %v228
    %v230 = vand.u32 %v229, 4294901760
    %231 = vmatmul.f32.gmra.mxu0 %v230
    %v232 = vpop.f32.mrf.mxu0
    %v233 = vadd.f32 %v192, %v232
    %v234 = vand.u32 %v67, 4294901760
    %v235 = vsub.f32 %v67, %v234
    %v236 = vand.u32 %v235, 4294901760
    %237 = vmatmul.f32.gmra.mxu0 %v236
    %v238 = vpop.f32.mrf.mxu0
    %v239 = vadd.f32 %v197, %v238
    %240 = vdwg.mxu0
    %241 = vmatpush.xpose.msra.mxu0 0.0
    %242 = vmatpush.xpose.msra.mxu0 0.0
    %243 = vmatpush.xpose.msra.mxu0 0.0
    %244 = vmatpush.xpose.msra.mxu0 0.0
    %245 = vmatpush.xpose.msra.mxu0 0.0
    %246 = vmatpush.xpose.msra.mxu0 0.0
    %247 = vmatpush.xpose.msra.mxu0 0.0
    %248 = vmatpush.xpose.msra.mxu0 0.0
    %249 = vmatpush.xpose.msra.mxu0 0.0
    %250 = vmatpush.xpose.msra.mxu0 0.0
    %251 = vmatpush.xpose.msra.mxu0 0.0
    %252 = vmatpush.xpose.msra.mxu0 0.0
    %253 = vmatpush.xpose.msra.mxu0 0.0
    %254 = vmatpush.xpose.msra.mxu0 0.0
    %255 = vmatpush.xpose.msra.mxu0 0.0
    %v256 = vand.u32 %v70, 4294901760
    %v257 = vsub.f32 %v70, %v256
    %v258 = vand.u32 %v257, 4294901760
    %259 = vmatpush.xpose.msra.mxu0 %v258
    %v260 = vand.u32 %v58, 4294901760
    %261 = vmatmul.f32.gmra.mxu0 %v260
    %v262 = vpop.f32.mrf.mxu0
    %v263 = vadd.f32 %v221, %v262
    %v264 = vand.u32 %v61, 4294901760
    %265 = vmatmul.f32.gmra.mxu0 %v264
    %v266 = vpop.f32.mrf.mxu0
    %v267 = vadd.f32 %v227, %v266
    %v268 = vand.u32 %v64, 4294901760
    %269 = vmatmul.f32.gmra.mxu0 %v268
    %v270 = vpop.f32.mrf.mxu0
    %v271 = vadd.f32 %v233, %v270
    %v272 = vand.u32 %v67, 4294901760
    %273 = vmatmul.f32.gmra.mxu0 %v272
    %v274 = vpop.f32.mrf.mxu0
    %v275 = vadd.f32 %v239, %v274
    %276 = vdwg.mxu0
    %277 = vmatpush.xpose.msra.mxu0 0.0
    %278 = vmatpush.xpose.msra.mxu0 0.0
    %279 = vmatpush.xpose.msra.mxu0 0.0
    %280 = vmatpush.xpose.msra.mxu0 0.0
    %281 = vmatpush.xpose.msra.mxu0 0.0
    %282 = vmatpush.xpose.msra.mxu0 0.0
    %283 = vmatpush.xpose.msra.mxu0 0.0
    %284 = vmatpush.xpose.msra.mxu0 0.0
    %285 = vmatpush.xpose.msra.mxu0 0.0
    %286 = vmatpush.xpose.msra.mxu0 0.0
    %287 = vmatpush.xpose.msra.mxu0 0.0
    %288 = vmatpush.xpose.msra.mxu0 0.0
    %289 = vmatpush.xpose.msra.mxu0 0.0
    %290 = vmatpush.xpose.msra.mxu0 0.0
    %291 = vmatpush.xpose.msra.mxu0 0.0
    %v292 = vand.u32 %v70, 4294901760
    %293 = vmatpush.xpose.msra.mxu0 %v292
    %v294 = vand.u32 %v58, 4294901760
    %295 = vmatmul.f32.gmra.mxu0 %v294
    %v296 = vpop.f32.mrf.mxu0
    %v297 = vadd.f32 %v263, %v296
    %v298 = vand.u32 %v61, 4294901760
    %299 = vmatmul.f32.gmra.mxu0 %v298
    %v300 = vpop.f32.mrf.mxu0
    %v301 = vadd.f32 %v267, %v300
    %v302 = vand.u32 %v64, 4294901760
    %303 = vmatmul.f32.gmra.mxu0 %v302
    %v304 = vpop.f32.mrf.mxu0
    %v305 = vadd.f32 %v271, %v304
    %v306 = vand.u32 %v67, 4294901760
    %307 = vmatmul.f32.gmra.mxu0 %v306
    %v308 = vpop.f32.mrf.mxu0
    %v309 = vadd.f32 %v275, %v308
    %310 = vdwg.mxu0
    %vm311 = vcmp.ge.f32.partialorder %v297, 0.0
    %vm312 = vcmp.ge.f32.partialorder %v301, 0.0
    %vm313 = vcmp.ge.f32.partialorder %v305, 0.0
    %vm314 = vcmp.ge.f32.partialorder %v309, 0.0
    %v315 = vmul.f32 %v297, 0.2
    %v316 = vmul.f32 %v301, 0.2
    %v317 = vmul.f32 %v305, 0.2
    %v318 = vmul.f32 %v309, 0.2
    %v319 = vsel %vm311, %v297, %v315
    %v320 = vsel %vm312, %v301, %v316
    %v321 = vsel %vm313, %v305, %v317
    %v322 = vsel %vm314, %v309, %v318
    %v323 = vld [vmem:[%s3] sm:$0xff]
    %v324 = vld [vmem:[%s3 + $0x8] sm:$0xff]
    %v325 = vld [vmem:[%s3 + $0x10] sm:$0xff]
    %v326 = vld [vmem:[%s3 + $0x18] sm:$0xff]
    %v327 = vld [vmem:[%s4] sm:$0xff]
    %v328 = vld [vmem:[%s4 + $0x8] sm:$0xff]
    %v329 = vld [vmem:[%s4 + $0x10] sm:$0xff]
    %v330 = vld [vmem:[%s4 + $0x18] sm:$0xff]
    %332 = vset.pattern.permute.xlu0 0
    %333 = vperm.xlu0 %332, %v327
    %v334 = vpop.permute.xlu0 %333
    %337 = vset.pattern.permute.xlu0 0
    %338 = vperm.xlu0 %337, %v328
    %v339 = vpop.permute.xlu0 %338
    %342 = vset.pattern.permute.xlu0 0
    %343 = vperm.xlu0 %342, %v329
    %v344 = vpop.permute.xlu0 %343
    %347 = vset.pattern.permute.xlu0 0
    %348 = vperm.xlu0 %347, %v330
    %v349 = vpop.permute.xlu0 %348
    %vm351 = vcmask 261120
    %v353 = vsel %vm351, %v323, 0
    %v356 = vsel %vm351, %v324, 0
    %v359 = vsel %vm351, %v325, 0
    %v362 = vsel %vm351, %v326, 0
    %364 = vmatpush.msra.mxu0 0.0
    %365 = vmatpush.msra.mxu0 0.0
    %366 = vmatpush.msra.mxu0 0.0
    %367 = vmatpush.msra.mxu0 0.0
    %368 = vmatpush.msra.mxu0 0.0
    %369 = vmatpush.msra.mxu0 0.0
    %370 = vmatpush.msra.mxu0 0.0
    %371 = vmatpush.msra.mxu0 0.0
    %372 = vmatpush.msra.mxu0 0.0
    %373 = vmatpush.msra.mxu0 0.0
    %374 = vmatpush.msra.mxu0 0.0
    %375 = vmatpush.msra.mxu0 0.0
    %v376 = vand.u32 %v322, 4294901760
    %377 = vmatpush.msra.mxu0 %v376
    %v378 = vand.u32 %v321, 4294901760
    %379 = vmatpush.msra.mxu0 %v378
    %v380 = vand.u32 %v320, 4294901760
    %381 = vmatpush.msra.mxu0 %v380
    %v382 = vand.u32 %v319, 4294901760
    %383 = vmatpush.msra.mxu0 %v382
    %v384 = vand.u32 %v353, 4294901760
    %v385 = vsub.f32 %v353, %v384
    %v386 = vand.u32 %v385, 4294901760
    %v387 = vsub.f32 %v385, %v386
    %v388 = vand.u32 %v387, 4294901760
    %389 = vmatmul.f32.gmra.mxu0 %v388
    %v390 = vpop.f32.mrf.mxu0
    %v391 = vadd.f32 %v334, %v390
    %v392 = vand.u32 %v356, 4294901760
    %v393 = vsub.f32 %v356, %v392
    %v394 = vand.u32 %v393, 4294901760
    %v395 = vsub.f32 %v393, %v394
    %v396 = vand.u32 %v395, 4294901760
    %397 = vmatmul.f32.gmra.mxu0 %v396
    %v398 = vpop.f32.mrf.mxu0
    %v399 = vadd.f32 %v339, %v398
    %v400 = vand.u32 %v359, 4294901760
    %v401 = vsub.f32 %v359, %v400
    %v402 = vand.u32 %v401, 4294901760
    %v403 = vsub.f32 %v401, %v402
    %v404 = vand.u32 %v403, 4294901760
    %405 = vmatmul.f32.gmra.mxu0 %v404
    %v406 = vpop.f32.mrf.mxu0
    %v407 = vadd.f32 %v344, %v406
    %v408 = vand.u32 %v362, 4294901760
    %v409 = vsub.f32 %v362, %v408
    %v410 = vand.u32 %v409, 4294901760
    %v411 = vsub.f32 %v409, %v410
    %v412 = vand.u32 %v411, 4294901760
    %413 = vmatmul.f32.gmra.mxu0 %v412
    %v414 = vpop.f32.mrf.mxu0
    %v415 = vadd.f32 %v349, %v414
    %416 = vdwg.mxu0
    %417 = vmatpush.msra.mxu0 0.0
    %418 = vmatpush.msra.mxu0 0.0
    %419 = vmatpush.msra.mxu0 0.0
    %420 = vmatpush.msra.mxu0 0.0
    %421 = vmatpush.msra.mxu0 0.0
    %422 = vmatpush.msra.mxu0 0.0
    %423 = vmatpush.msra.mxu0 0.0
    %424 = vmatpush.msra.mxu0 0.0
    %425 = vmatpush.msra.mxu0 0.0
    %426 = vmatpush.msra.mxu0 0.0
    %427 = vmatpush.msra.mxu0 0.0
    %428 = vmatpush.msra.mxu0 0.0
    %v429 = vand.u32 %v322, 4294901760
    %v430 = vsub.f32 %v322, %v429
    %v431 = vand.u32 %v430, 4294901760
    %v432 = vsub.f32 %v430, %v431
    %v433 = vand.u32 %v432, 4294901760
    %434 = vmatpush.msra.mxu0 %v433
    %v435 = vand.u32 %v321, 4294901760
    %v436 = vsub.f32 %v321, %v435
    %v437 = vand.u32 %v436, 4294901760
    %v438 = vsub.f32 %v436, %v437
    %v439 = vand.u32 %v438, 4294901760
    %440 = vmatpush.msra.mxu0 %v439
    %v441 = vand.u32 %v320, 4294901760
    %v442 = vsub.f32 %v320, %v441
    %v443 = vand.u32 %v442, 4294901760
    %v444 = vsub.f32 %v442, %v443
    %v445 = vand.u32 %v444, 4294901760
    %446 = vmatpush.msra.mxu0 %v445
    %v447 = vand.u32 %v319, 4294901760
    %v448 = vsub.f32 %v319, %v447
    %v449 = vand.u32 %v448, 4294901760
    %v450 = vsub.f32 %v448, %v449
    %v451 = vand.u32 %v450, 4294901760
    %452 = vmatpush.msra.mxu0 %v451
    %v453 = vand.u32 %v353, 4294901760
    %454 = vmatmul.f32.gmra.mxu0 %v453
    %v455 = vpop.f32.mrf.mxu0
    %v456 = vadd.f32 %v391, %v455
    %v457 = vand.u32 %v356, 4294901760
    %458 = vmatmul.f32.gmra.mxu0 %v457
    %v459 = vpop.f32.mrf.mxu0
    %v460 = vadd.f32 %v399, %v459
    %v461 = vand.u32 %v359, 4294901760
    %462 = vmatmul.f32.gmra.mxu0 %v461
    %v463 = vpop.f32.mrf.mxu0
    %v464 = vadd.f32 %v407, %v463
    %v465 = vand.u32 %v362, 4294901760
    %466 = vmatmul.f32.gmra.mxu0 %v465
    %v467 = vpop.f32.mrf.mxu0
    %v468 = vadd.f32 %v415, %v467
    %469 = vdwg.mxu0
    %470 = vmatpush.msra.mxu0 0.0
    %471 = vmatpush.msra.mxu0 0.0
    %472 = vmatpush.msra.mxu0 0.0
    %473 = vmatpush.msra.mxu0 0.0
    %474 = vmatpush.msra.mxu0 0.0
    %475 = vmatpush.msra.mxu0 0.0
    %476 = vmatpush.msra.mxu0 0.0
    %477 = vmatpush.msra.mxu0 0.0
    %478 = vmatpush.msra.mxu0 0.0
    %479 = vmatpush.msra.mxu0 0.0
    %480 = vmatpush.msra.mxu0 0.0
    %481 = vmatpush.msra.mxu0 0.0
    %v482 = vand.u32 %v322, 4294901760
    %v483 = vsub.f32 %v322, %v482
    %484 = vmatpush.msra.mxu0 %v483
    %v485 = vand.u32 %v321, 4294901760
    %v486 = vsub.f32 %v321, %v485
    %487 = vmatpush.msra.mxu0 %v486
    %v488 = vand.u32 %v320, 4294901760
    %v489 = vsub.f32 %v320, %v488
    %490 = vmatpush.msra.mxu0 %v489
    %v491 = vand.u32 %v319, 4294901760
    %v492 = vsub.f32 %v319, %v491
    %493 = vmatpush.msra.mxu0 %v492
    %v494 = vand.u32 %v353, 4294901760
    %v495 = vsub.f32 %v353, %v494
    %496 = vmatmul.f32.gmra.mxu0 %v495
    %v497 = vpop.f32.mrf.mxu0
    %v498 = vadd.f32 %v456, %v497
    %v499 = vand.u32 %v356, 4294901760
    %v500 = vsub.f32 %v356, %v499
    %501 = vmatmul.f32.gmra.mxu0 %v500
    %v502 = vpop.f32.mrf.mxu0
    %v503 = vadd.f32 %v460, %v502
    %v504 = vand.u32 %v359, 4294901760
    %v505 = vsub.f32 %v359, %v504
    %506 = vmatmul.f32.gmra.mxu0 %v505
    %v507 = vpop.f32.mrf.mxu0
    %v508 = vadd.f32 %v464, %v507
    %v509 = vand.u32 %v362, 4294901760
    %v510 = vsub.f32 %v362, %v509
    %511 = vmatmul.f32.gmra.mxu0 %v510
    %v512 = vpop.f32.mrf.mxu0
    %v513 = vadd.f32 %v468, %v512
    %514 = vdwg.mxu0
    %515 = vmatpush.msra.mxu0 0.0
    %516 = vmatpush.msra.mxu0 0.0
    %517 = vmatpush.msra.mxu0 0.0
    %518 = vmatpush.msra.mxu0 0.0
    %519 = vmatpush.msra.mxu0 0.0
    %520 = vmatpush.msra.mxu0 0.0
    %521 = vmatpush.msra.mxu0 0.0
    %522 = vmatpush.msra.mxu0 0.0
    %523 = vmatpush.msra.mxu0 0.0
    %524 = vmatpush.msra.mxu0 0.0
    %525 = vmatpush.msra.mxu0 0.0
    %526 = vmatpush.msra.mxu0 0.0
    %v527 = vand.u32 %v322, 4294901760
    %528 = vmatpush.msra.mxu0 %v527
    %v529 = vand.u32 %v321, 4294901760
    %530 = vmatpush.msra.mxu0 %v529
    %v531 = vand.u32 %v320, 4294901760
    %532 = vmatpush.msra.mxu0 %v531
    %v533 = vand.u32 %v319, 4294901760
    %534 = vmatpush.msra.mxu0 %v533
    %v535 = vand.u32 %v353, 4294901760
    %v536 = vsub.f32 %v353, %v535
    %v537 = vand.u32 %v536, 4294901760
    %538 = vmatmul.f32.gmra.mxu0 %v537
    %v539 = vpop.f32.mrf.mxu0
    %v540 = vadd.f32 %v498, %v539
    %v541 = vand.u32 %v356, 4294901760
    %v542 = vsub.f32 %v356, %v541
    %v543 = vand.u32 %v542, 4294901760
    %544 = vmatmul.f32.gmra.mxu0 %v543
    %v545 = vpop.f32.mrf.mxu0
    %v546 = vadd.f32 %v503, %v545
    %v547 = vand.u32 %v359, 4294901760
    %v548 = vsub.f32 %v359, %v547
    %v549 = vand.u32 %v548, 4294901760
    %550 = vmatmul.f32.gmra.mxu0 %v549
    %v551 = vpop.f32.mrf.mxu0
    %v552 = vadd.f32 %v508, %v551
    %v553 = vand.u32 %v362, 4294901760
    %v554 = vsub.f32 %v362, %v553
    %v555 = vand.u32 %v554, 4294901760
    %556 = vmatmul.f32.gmra.mxu0 %v555
    %v557 = vpop.f32.mrf.mxu0
    %v558 = vadd.f32 %v513, %v557
    %559 = vdwg.mxu0
    %560 = vmatpush.msra.mxu0 0.0
    %561 = vmatpush.msra.mxu0 0.0
    %562 = vmatpush.msra.mxu0 0.0
    %563 = vmatpush.msra.mxu0 0.0
    %564 = vmatpush.msra.mxu0 0.0
    %565 = vmatpush.msra.mxu0 0.0
    %566 = vmatpush.msra.mxu0 0.0
    %567 = vmatpush.msra.mxu0 0.0
    %568 = vmatpush.msra.mxu0 0.0
    %569 = vmatpush.msra.mxu0 0.0
    %570 = vmatpush.msra.mxu0 0.0
    %571 = vmatpush.msra.mxu0 0.0
    %v572 = vand.u32 %v322, 4294901760
    %v573 = vsub.f32 %v322, %v572
    %v574 = vand.u32 %v573, 4294901760
    %575 = vmatpush.msra.mxu0 %v574
    %v576 = vand.u32 %v321, 4294901760
    %v577 = vsub.f32 %v321, %v576
    %v578 = vand.u32 %v577, 4294901760
    %579 = vmatpush.msra.mxu0 %v578
    %v580 = vand.u32 %v320, 4294901760
    %v581 = vsub.f32 %v320, %v580
    %v582 = vand.u32 %v581, 4294901760
    %583 = vmatpush.msra.mxu0 %v582
    %v584 = vand.u32 %v319, 4294901760
    %v585 = vsub.f32 %v319, %v584
    %v586 = vand.u32 %v585, 4294901760
    %587 = vmatpush.msra.mxu0 %v586
    %v588 = vand.u32 %v353, 4294901760
    %589 = vmatmul.f32.gmra.mxu0 %v588
    %v590 = vpop.f32.mrf.mxu0
    %v591 = vadd.f32 %v540, %v590
    %v592 = vand.u32 %v356, 4294901760
    %593 = vmatmul.f32.gmra.mxu0 %v592
    %v594 = vpop.f32.mrf.mxu0
    %v595 = vadd.f32 %v546, %v594
    %v596 = vand.u32 %v359, 4294901760
    %597 = vmatmul.f32.gmra.mxu0 %v596
    %v598 = vpop.f32.mrf.mxu0
    %v599 = vadd.f32 %v552, %v598
    %v600 = vand.u32 %v362, 4294901760
    %601 = vmatmul.f32.gmra.mxu0 %v600
    %v602 = vpop.f32.mrf.mxu0
    %v603 = vadd.f32 %v558, %v602
    %604 = vdwg.mxu0
    %605 = vmatpush.msra.mxu0 0.0
    %606 = vmatpush.msra.mxu0 0.0
    %607 = vmatpush.msra.mxu0 0.0
    %608 = vmatpush.msra.mxu0 0.0
    %609 = vmatpush.msra.mxu0 0.0
    %610 = vmatpush.msra.mxu0 0.0
    %611 = vmatpush.msra.mxu0 0.0
    %612 = vmatpush.msra.mxu0 0.0
    %613 = vmatpush.msra.mxu0 0.0
    %614 = vmatpush.msra.mxu0 0.0
    %615 = vmatpush.msra.mxu0 0.0
    %616 = vmatpush.msra.mxu0 0.0
    %v617 = vand.u32 %v322, 4294901760
    %618 = vmatpush.msra.mxu0 %v617
    %v619 = vand.u32 %v321, 4294901760
    %620 = vmatpush.msra.mxu0 %v619
    %v621 = vand.u32 %v320, 4294901760
    %622 = vmatpush.msra.mxu0 %v621
    %v623 = vand.u32 %v319, 4294901760
    %624 = vmatpush.msra.mxu0 %v623
    %v625 = vand.u32 %v353, 4294901760
    %626 = vmatmul.f32.gmra.mxu0 %v625
    %v627 = vpop.f32.mrf.mxu0
    %v628 = vadd.f32 %v591, %v627
    %v629 = vand.u32 %v356, 4294901760
    %630 = vmatmul.f32.gmra.mxu0 %v629
    %v631 = vpop.f32.mrf.mxu0
    %v632 = vadd.f32 %v595, %v631
    %v633 = vand.u32 %v359, 4294901760
    %634 = vmatmul.f32.gmra.mxu0 %v633
    %v635 = vpop.f32.mrf.mxu0
    %v636 = vadd.f32 %v599, %v635
    %v637 = vand.u32 %v362, 4294901760
    %638 = vmatmul.f32.gmra.mxu0 %v637
    %v639 = vpop.f32.mrf.mxu0
    %v640 = vadd.f32 %v603, %v639
    %641 = vdwg.mxu0
    %vm642 = vcmp.ge.f32.partialorder %v628, 0.0
    %vm643 = vcmp.ge.f32.partialorder %v632, 0.0
    %vm644 = vcmp.ge.f32.partialorder %v636, 0.0
    %vm645 = vcmp.ge.f32.partialorder %v640, 0.0
    %v646 = vmul.f32 %v628, 0.2
    %v647 = vmul.f32 %v632, 0.2
    %v648 = vmul.f32 %v636, 0.2
    %v649 = vmul.f32 %v640, 0.2
    %v650 = vsel %vm642, %v628, %v646
    %v651 = vsel %vm643, %v632, %v647
    %v652 = vsel %vm644, %v636, %v648
    %v653 = vsel %vm645, %v640, %v649
    %v654 = vld [vmem:[%s5] sm:$0xff]
    %v655 = vld [vmem:[%s6] sm:$0xff]
    %657 = vset.pattern.permute.xlu0 0
    %658 = vperm.xlu0 %657, %v655
    %v659 = vpop.permute.xlu0 %658
    %v662 = vsel %vm351, %v654, 0
    %664 = vmatpush.msra.mxu0 0.0
    %665 = vmatpush.msra.mxu0 0.0
    %666 = vmatpush.msra.mxu0 0.0
    %667 = vmatpush.msra.mxu0 0.0
    %668 = vmatpush.msra.mxu0 0.0
    %669 = vmatpush.msra.mxu0 0.0
    %670 = vmatpush.msra.mxu0 0.0
    %671 = vmatpush.msra.mxu0 0.0
    %672 = vmatpush.msra.mxu0 0.0
    %673 = vmatpush.msra.mxu0 0.0
    %674 = vmatpush.msra.mxu0 0.0
    %675 = vmatpush.msra.mxu0 0.0
    %v676 = vand.u32 %v653, 4294901760
    %677 = vmatpush.msra.mxu0 %v676
    %v678 = vand.u32 %v652, 4294901760
    %679 = vmatpush.msra.mxu0 %v678
    %v680 = vand.u32 %v651, 4294901760
    %681 = vmatpush.msra.mxu0 %v680
    %v682 = vand.u32 %v650, 4294901760
    %683 = vmatpush.msra.mxu0 %v682
    %v684 = vand.u32 %v662, 4294901760
    %v685 = vsub.f32 %v662, %v684
    %v686 = vand.u32 %v685, 4294901760
    %v687 = vsub.f32 %v685, %v686
    %v688 = vand.u32 %v687, 4294901760
    %689 = vmatmul.f32.gmra.mxu0 %v688
    %v690 = vpop.f32.mrf.mxu0
    %v691 = vadd.f32 %v659, %v690
    %692 = vdwg.mxu0
    %693 = vmatpush.msra.mxu0 0.0
    %694 = vmatpush.msra.mxu0 0.0
    %695 = vmatpush.msra.mxu0 0.0
    %696 = vmatpush.msra.mxu0 0.0
    %697 = vmatpush.msra.mxu0 0.0
    %698 = vmatpush.msra.mxu0 0.0
    %699 = vmatpush.msra.mxu0 0.0
    %700 = vmatpush.msra.mxu0 0.0
    %701 = vmatpush.msra.mxu0 0.0
    %702 = vmatpush.msra.mxu0 0.0
    %703 = vmatpush.msra.mxu0 0.0
    %704 = vmatpush.msra.mxu0 0.0
    %v705 = vand.u32 %v653, 4294901760
    %v706 = vsub.f32 %v653, %v705
    %v707 = vand.u32 %v706, 4294901760
    %v708 = vsub.f32 %v706, %v707
    %v709 = vand.u32 %v708, 4294901760
    %710 = vmatpush.msra.mxu0 %v709
    %v711 = vand.u32 %v652, 4294901760
    %v712 = vsub.f32 %v652, %v711
    %v713 = vand.u32 %v712, 4294901760
    %v714 = vsub.f32 %v712, %v713
    %v715 = vand.u32 %v714, 4294901760
    %716 = vmatpush.msra.mxu0 %v715
    %v717 = vand.u32 %v651, 4294901760
    %v718 = vsub.f32 %v651, %v717
    %v719 = vand.u32 %v718, 4294901760
    %v720 = vsub.f32 %v718, %v719
    %v721 = vand.u32 %v720, 4294901760
    %722 = vmatpush.msra.mxu0 %v721
    %v723 = vand.u32 %v650, 4294901760
    %v724 = vsub.f32 %v650, %v723
    %v725 = vand.u32 %v724, 4294901760
    %v726 = vsub.f32 %v724, %v725
    %v727 = vand.u32 %v726, 4294901760
    %728 = vmatpush.msra.mxu0 %v727
    %v729 = vand.u32 %v662, 4294901760
    %730 = vmatmul.f32.gmra.mxu0 %v729
    %v731 = vpop.f32.mrf.mxu0
    %v732 = vadd.f32 %v691, %v731
    %733 = vdwg.mxu0
    %734 = vmatpush.msra.mxu0 0.0
    %735 = vmatpush.msra.mxu0 0.0
    %736 = vmatpush.msra.mxu0 0.0
    %737 = vmatpush.msra.mxu0 0.0
    %738 = vmatpush.msra.mxu0 0.0
    %739 = vmatpush.msra.mxu0 0.0
    %740 = vmatpush.msra.mxu0 0.0
    %741 = vmatpush.msra.mxu0 0.0
    %742 = vmatpush.msra.mxu0 0.0
    %743 = vmatpush.msra.mxu0 0.0
    %744 = vmatpush.msra.mxu0 0.0
    %745 = vmatpush.msra.mxu0 0.0
    %v746 = vand.u32 %v653, 4294901760
    %v747 = vsub.f32 %v653, %v746
    %748 = vmatpush.msra.mxu0 %v747
    %v749 = vand.u32 %v652, 4294901760
    %v750 = vsub.f32 %v652, %v749
    %751 = vmatpush.msra.mxu0 %v750
    %v752 = vand.u32 %v651, 4294901760
    %v753 = vsub.f32 %v651, %v752
    %754 = vmatpush.msra.mxu0 %v753
    %v755 = vand.u32 %v650, 4294901760
    %v756 = vsub.f32 %v650, %v755
    %757 = vmatpush.msra.mxu0 %v756
    %v758 = vand.u32 %v662, 4294901760
    %v759 = vsub.f32 %v662, %v758
    %760 = vmatmul.f32.gmra.mxu0 %v759
    %v761 = vpop.f32.mrf.mxu0
    %v762 = vadd.f32 %v732, %v761
    %763 = vdwg.mxu0
    %764 = vmatpush.msra.mxu0 0.0
    %765 = vmatpush.msra.mxu0 0.0
    %766 = vmatpush.msra.mxu0 0.0
    %767 = vmatpush.msra.mxu0 0.0
    %768 = vmatpush.msra.mxu0 0.0
    %769 = vmatpush.msra.mxu0 0.0
    %770 = vmatpush.msra.mxu0 0.0
    %771 = vmatpush.msra.mxu0 0.0
    %772 = vmatpush.msra.mxu0 0.0
    %773 = vmatpush.msra.mxu0 0.0
    %774 = vmatpush.msra.mxu0 0.0
    %775 = vmatpush.msra.mxu0 0.0
    %v776 = vand.u32 %v653, 4294901760
    %777 = vmatpush.msra.mxu0 %v776
    %v778 = vand.u32 %v652, 4294901760
    %779 = vmatpush.msra.mxu0 %v778
    %v780 = vand.u32 %v651, 4294901760
    %781 = vmatpush.msra.mxu0 %v780
    %v782 = vand.u32 %v650, 4294901760
    %783 = vmatpush.msra.mxu0 %v782
    %v784 = vand.u32 %v662, 4294901760
    %v785 = vsub.f32 %v662, %v784
    %v786 = vand.u32 %v785, 4294901760
    %787 = vmatmul.f32.gmra.mxu0 %v786
    %v788 = vpop.f32.mrf.mxu0
    %v789 = vadd.f32 %v762, %v788
    %790 = vdwg.mxu0
    %791 = vmatpush.msra.mxu0 0.0
    %792 = vmatpush.msra.mxu0 0.0
    %793 = vmatpush.msra.mxu0 0.0
    %794 = vmatpush.msra.mxu0 0.0
    %795 = vmatpush.msra.mxu0 0.0
    %796 = vmatpush.msra.mxu0 0.0
    %797 = vmatpush.msra.mxu0 0.0
    %798 = vmatpush.msra.mxu0 0.0
    %799 = vmatpush.msra.mxu0 0.0
    %800 = vmatpush.msra.mxu0 0.0
    %801 = vmatpush.msra.mxu0 0.0
    %802 = vmatpush.msra.mxu0 0.0
    %v803 = vand.u32 %v653, 4294901760
    %v804 = vsub.f32 %v653, %v803
    %v805 = vand.u32 %v804, 4294901760
    %806 = vmatpush.msra.mxu0 %v805
    %v807 = vand.u32 %v652, 4294901760
    %v808 = vsub.f32 %v652, %v807
    %v809 = vand.u32 %v808, 4294901760
    %810 = vmatpush.msra.mxu0 %v809
    %v811 = vand.u32 %v651, 4294901760
    %v812 = vsub.f32 %v651, %v811
    %v813 = vand.u32 %v812, 4294901760
    %814 = vmatpush.msra.mxu0 %v813
    %v815 = vand.u32 %v650, 4294901760
    %v816 = vsub.f32 %v650, %v815
    %v817 = vand.u32 %v816, 4294901760
    %818 = vmatpush.msra.mxu0 %v817
    %v819 = vand.u32 %v662, 4294901760
    %820 = vmatmul.f32.gmra.mxu0 %v819
    %v821 = vpop.f32.mrf.mxu0
    %v822 = vadd.f32 %v789, %v821
    %823 = vdwg.mxu0
    %824 = vmatpush.msra.mxu0 0.0
    %825 = vmatpush.msra.mxu0 0.0
    %826 = vmatpush.msra.mxu0 0.0
    %827 = vmatpush.msra.mxu0 0.0
    %828 = vmatpush.msra.mxu0 0.0
    %829 = vmatpush.msra.mxu0 0.0
    %830 = vmatpush.msra.mxu0 0.0
    %831 = vmatpush.msra.mxu0 0.0
    %832 = vmatpush.msra.mxu0 0.0
    %833 = vmatpush.msra.mxu0 0.0
    %834 = vmatpush.msra.mxu0 0.0
    %835 = vmatpush.msra.mxu0 0.0
    %v836 = vand.u32 %v653, 4294901760
    %837 = vmatpush.msra.mxu0 %v836
    %v838 = vand.u32 %v652, 4294901760
    %839 = vmatpush.msra.mxu0 %v838
    %v840 = vand.u32 %v651, 4294901760
    %841 = vmatpush.msra.mxu0 %v840
    %v842 = vand.u32 %v650, 4294901760
    %843 = vmatpush.msra.mxu0 %v842
    %v844 = vand.u32 %v662, 4294901760
    %845 = vmatmul.f32.gmra.mxu0 %v844
    %v846 = vpop.f32.mrf.mxu0
    %v847 = vadd.f32 %v822, %v846
    %848 = vdwg.mxu0
    %849 = vxpose.xlu0.b32.start [1/16] %v847, 128
    %850 = vxpose.xlu0.b32.cont [2/16] 0.0, 128
    %851 = vxpose.xlu0.b32.cont [3/16] 0.0, 128
    %852 = vxpose.xlu0.b32.cont [4/16] 0.0, 128
    %853 = vxpose.xlu0.b32.cont [5/16] 0.0, 128
    %854 = vxpose.xlu0.b32.cont [6/16] 0.0, 128
    %855 = vxpose.xlu0.b32.cont [7/16] 0.0, 128
    %856 = vxpose.xlu0.b32.cont [8/16] 0.0, 128
    %857 = vxpose.xlu0.b32.cont [9/16] 0.0, 128
    %858 = vxpose.xlu0.b32.cont [10/16] 0.0, 128
    %859 = vxpose.xlu0.b32.cont [11/16] 0.0, 128
    %860 = vxpose.xlu0.b32.cont [12/16] 0.0, 128
    %861 = vxpose.xlu0.b32.cont [13/16] 0.0, 128
    %862 = vxpose.xlu0.b32.cont [14/16] 0.0, 128
    %863 = vxpose.xlu0.b32.cont [15/16] 0.0, 128
    %864 = vxpose.xlu0.b32.end [16/16] 0.0, 128
    %v865 = vpop.trf.xlu0
    %v866 = vpop.trf.xlu0
    %v867 = vpop.trf.xlu0
    %v868 = vpop.trf.xlu0
    %v869 = vpop.trf.xlu0
    %v870 = vpop.trf.xlu0
    %v871 = vpop.trf.xlu0
    %v872 = vpop.trf.xlu0
    %v873 = vpop.trf.xlu0
    %v874 = vpop.trf.xlu0
    %v875 = vpop.trf.xlu0
    %v876 = vpop.trf.xlu0
    %v877 = vpop.trf.xlu0
    %v878 = vpop.trf.xlu0
    %v879 = vpop.trf.xlu0
    %v880 = vpop.trf.xlu0
    %vm881 = vcmask 64512
    %882 = vst.msk [vmem:[#allocation2] sm:$0xff] %vm881, %v865
    // Predicated region
    $region30: #{tpu_custom_call.1} parent=1 // pred_check
      _
    $region31: #{tpu_custom_call.1} parent=1 // pred_check_branch
      %884 = sbr.rel (0) target = $region33
    $region32: #{tpu_custom_call.1} parent=1 // pred_region
      %886 = vsyncadd [#allocation3], 0
      %s888 = sshll.u32 [#allocation2], 4
      %s889 = int_to_ptr.vmem [resolvable:$true] %s888
      %s890 = sshll.u32 %s7, 4
      %s891 = int_to_ptr.hbm [resolvable:$true] %s890
      %893 = dma.vmem_to_hbm [thread:$0]  %s889, 128, %s891, [#allocation3]
    $region33: #{tpu_custom_call.1} parent=1 // pred_fallthru
      _
    // Predicated region
    $region34: #{tpu_custom_call.1} parent=1 // pred_check
      _
    $region35: #{tpu_custom_call.1} parent=1 // pred_check_branch
      %895 = sbr.rel (0) target = $region37
    $region36: #{tpu_custom_call.1} parent=1 // pred_region
      %897 = dma.done [#allocation3], 128
    $region37: #{tpu_custom_call.1} parent=1 // pred_fallthru
      _
    %898 = vsyncpa [#allocation3], 1

</llo_original>
